<compile_context>
chip_gen: v7x
topology: tpu7x:2x2x1
jax: 0.10.0
libtpu: 0.0.40
codegen_flags: <defaults>
</compile_context>

<pallas_src>
import jax
import jax.numpy as jnp
from jax.experimental import pallas as pl
from jax.experimental.pallas import tpu as pltpu

NUM_INPUTS = 1
NUM_HIDDEN = 10
NUM_OUTPUTS = 1
BETA = 0.9          # kept for a future multi-timestep variant (unused: zero init)
THRESHOLD = 1.0
LANES = 128         # lane width: hidden/output features padded to this


def snn_kernel(x_ref, w1_ref, b1_ref, w2_ref, b2_ref, out_ref):
    """One batch tile. All feature axes are padded to 128 lanes (zeros)."""
    x = x_ref[...]                                     # (TB, 1)

    # fc1: K == 1, so x @ W1 is an outer product -> pure VPU broadcast multiply.
    cur1 = x * w1_ref[...] + b1_ref[...]               # (TB,1)*(1,128)+(1,128) -> (TB,128)

    # lif1: zero initial membrane => mem1 = cur1; Heaviside fire.
    spk1 = (cur1 > THRESHOLD).astype(jnp.float32)      # padded lanes: 0 > 1 -> 0

    # fc2: N == 1, so spk1 @ W2 is a lane reduction (padded lanes contribute 0).
    cur2 = jnp.sum(spk1 * w2_ref[...], axis=-1, keepdims=True) + b2_ref[...]   # (TB, 1)

    # lif2: mem2 = cur2; fire.
    spk2 = (cur2 > THRESHOLD).astype(jnp.float32)      # (TB, 1)

    # Pack both outputs into one lane-dense slab: lane 0 = spk2, lane 1 = mem2.
    lane = jax.lax.broadcasted_iota(jnp.int32, out_ref.shape, 1)   # (TB, 128)
    out_ref[...] = jnp.where(lane == 0, spk2, 0.0) + jnp.where(lane == 1, cur2, 0.0)


def snn_forward(x, w1, b1, w2, b2):
    """x: (B, num_inputs) f32.
    w1: (num_inputs, num_hidden)  = fc1.weight.T
    b1: (num_hidden,)
    w2: (num_hidden, num_outputs) = fc2.weight.T
    b2: (num_outputs,)
    Returns (spk2, mem2), each (B, num_outputs) f32."""
    B = x.shape[0]
    f32 = jnp.float32

    # Zero-pad feature dims to full lane width (free on the VPU, unmasked vregs).
    w1_p = jnp.zeros((NUM_INPUTS, LANES), f32).at[:, :NUM_HIDDEN].set(w1.astype(f32))
    b1_p = jnp.zeros((1, LANES), f32).at[0, :NUM_HIDDEN].set(b1.astype(f32))
    w2_p = jnp.zeros((1, LANES), f32).at[0, :NUM_HIDDEN].set(w2[:, 0].astype(f32))
    b2_p = jnp.reshape(b2.astype(f32), (1, 1))

    # Batch tiling: TB rows per grid step (sublane-aligned), weights stay resident.
    TB = 512 if B >= 512 else max(8, -(-B // 8) * 8)
    B_pad = -(-B // TB) * TB
    if B_pad != B:
        x_p = jnp.zeros((B_pad, NUM_INPUTS), f32).at[:B, :].set(x.astype(f32))
    else:
        x_p = x.astype(f32)
    grid = (B_pad // TB,)

    out = pl.pallas_call(
        snn_kernel,
        out_shape=jax.ShapeDtypeStruct((B_pad, LANES), f32),
        grid=grid,
        in_specs=[
            pl.BlockSpec((TB, NUM_INPUTS), lambda i: (i, 0)),   # x tile
            pl.BlockSpec((NUM_INPUTS, LANES), lambda i: (0, 0)),  # w1 (resident)
            pl.BlockSpec((1, LANES), lambda i: (0, 0)),          # b1 (resident)
            pl.BlockSpec((1, LANES), lambda i: (0, 0)),          # w2 (resident)
            pl.BlockSpec((1, 1), lambda i: (0, 0)),              # b2 (resident)
        ],
        out_specs=pl.BlockSpec((TB, LANES), lambda i: (i, 0)),   # packed slab
        compiler_params=pltpu.CompilerParams(
            dimension_semantics=("parallel",)),
    )(x_p, w1_p, b1_p, w2_p, b2_p)

    spk2 = out[:B, 0:NUM_OUTPUTS]
    mem2 = out[:B, 1:1 + NUM_OUTPUTS]
    return spk2, mem2


def init_params(key):
    """Deterministic init mimicking nn.Linear's uniform(-1/sqrt(fan_in), ...)."""
    k1, k2, k3, k4 = jax.random.split(key, 4)
    bound1 = 1.0 / jnp.sqrt(jnp.float32(NUM_INPUTS))
    bound2 = 1.0 / jnp.sqrt(jnp.float32(NUM_HIDDEN))
    # PyTorch weight is (out, in); we store the transpose (in, out).
    w1 = jax.random.uniform(k1, (NUM_INPUTS, NUM_HIDDEN), jnp.float32, -bound1, bound1)
    b1 = jax.random.uniform(k2, (NUM_HIDDEN,), jnp.float32, -bound1, bound1)
    w2 = jax.random.uniform(k3, (NUM_HIDDEN, NUM_OUTPUTS), jnp.float32, -bound2, bound2)
    b2 = jax.random.uniform(k4, (NUM_OUTPUTS,), jnp.float32, -bound2, bound2)
    return w1, b1, w2, b2


if __name__ == "__main__":
    key = jax.random.PRNGKey(0)
    k_x, k_p = jax.random.split(key)

    B = 8
    x = jax.random.normal(k_x, (B, NUM_INPUTS), jnp.float32) * 2.0
    w1, b1, w2, b2 = init_params(k_p)

    spk2, mem2 = snn_forward(x, w1, b1, w2, b2)
    jax.block_until_ready((spk2, mem2))

    # Pure-JAX reference (single Leaky step, zero-initialized membranes).
    cur1 = x @ w1 + b1[None, :]
    spk1_ref = (cur1 > THRESHOLD).astype(jnp.float32)
    cur2 = spk1_ref @ w2 + b2[None, :]
    spk2_ref = (cur2 > THRESHOLD).astype(jnp.float32)

    assert spk2.shape == (B, NUM_OUTPUTS) and mem2.shape == (B, NUM_OUTPUTS)
    assert jnp.allclose(mem2, cur2, atol=1e-5), "mem2 mismatch"
    assert jnp.allclose(spk2, spk2_ref), "spk2 mismatch"

    print("KERNEL_OK")
</pallas_src>

<mosaic_0001>
module attributes {stable_mosaic.version = 11 : i64} {
  func.func @snn_kernel(%arg0: i32, %arg1: memref<8x1xf32, #tpu.memory_space<vmem>>, %arg2: memref<1x128xf32, #tpu.memory_space<vmem>>, %arg3: memref<1x128xf32, #tpu.memory_space<vmem>>, %arg4: memref<1x128xf32, #tpu.memory_space<vmem>>, %arg5: memref<1x1xf32, #tpu.memory_space<vmem>>, %arg6: memref<8x128xf32, #tpu.memory_space<vmem>>) attributes {dimension_semantics = [#tpu.dimension_semantics<parallel>], iteration_bounds = array<i64: 1>, scalar_prefetch = 0 : i64, scratch_operands = 0 : i64, tpu.core_type = #tpu.core_type<tc>, window_params = [{transform_indices = @transform_0, window_bounds = array<i64: 8, 1>}, {pipeline_mode = #tpu.pipeline_mode<synchronous>, transform_indices = @transform_1, window_bounds = array<i64: 1, 128>}, {pipeline_mode = #tpu.pipeline_mode<synchronous>, transform_indices = @transform_2, window_bounds = array<i64: 1, 128>}, {pipeline_mode = #tpu.pipeline_mode<synchronous>, transform_indices = @transform_3, window_bounds = array<i64: 1, 128>}, {pipeline_mode = #tpu.pipeline_mode<synchronous>, transform_indices = @transform_4, window_bounds = array<i64: 1, 1>}, {transform_indices = @transform_5, window_bounds = array<i64: 8, 128>}]} {
    %c0 = arith.constant 0 : index
    %c0_0 = arith.constant 0 : index
    %0 = vector.load %arg1[%c0, %c0_0] : memref<8x1xf32, #tpu.memory_space<vmem>>, vector<8x1xf32>
    %c0_1 = arith.constant 0 : index
    %c0_2 = arith.constant 0 : index
    %1 = vector.load %arg2[%c0_1, %c0_2] : memref<1x128xf32, #tpu.memory_space<vmem>>, vector<1x128xf32>
    %2 = vector.broadcast %0 : vector<8x1xf32> to vector<8x128xf32>
    %3 = vector.broadcast %1 : vector<1x128xf32> to vector<8x128xf32>
    %4 = arith.mulf %2, %3 : vector<8x128xf32>
    %c0_3 = arith.constant 0 : index
    %c0_4 = arith.constant 0 : index
    %5 = vector.load %arg3[%c0_3, %c0_4] : memref<1x128xf32, #tpu.memory_space<vmem>>, vector<1x128xf32>
    %6 = vector.broadcast %5 : vector<1x128xf32> to vector<8x128xf32>
    %7 = arith.addf %4, %6 : vector<8x128xf32>
    %cst = arith.constant 1.000000e+00 : f32
    %8 = vector.broadcast %cst : f32 to vector<8x128xf32>
    %9 = arith.cmpf ogt, %7, %8 : vector<8x128xf32>
    %10 = arith.extui %9 : vector<8x128xi1> to vector<8x128xi32>
    %11 = arith.sitofp %10 : vector<8x128xi32> to vector<8x128xf32>
    %c0_5 = arith.constant 0 : index
    %c0_6 = arith.constant 0 : index
    %12 = vector.load %arg4[%c0_5, %c0_6] : memref<1x128xf32, #tpu.memory_space<vmem>>, vector<1x128xf32>
    %13 = vector.broadcast %12 : vector<1x128xf32> to vector<8x128xf32>
    %14 = arith.mulf %11, %13 : vector<8x128xf32>
    %cst_7 = arith.constant dense<0.000000e+00> : vector<8xf32>
    %15 = vector.multi_reduction <add>, %14, %cst_7 [1] : vector<8x128xf32> to vector<8xf32>
    %16 = vector.shape_cast %15 : vector<8xf32> to vector<8x1xf32>
    %c0_8 = arith.constant 0 : index
    %c0_9 = arith.constant 0 : index
    %17 = vector.load %arg5[%c0_8, %c0_9] : memref<1x1xf32, #tpu.memory_space<vmem>>, vector<1x1xf32>
    %18 = vector.broadcast %17 : vector<1x1xf32> to vector<8x1xf32>
    %19 = arith.addf %16, %18 : vector<8x1xf32>
    %cst_10 = arith.constant 1.000000e+00 : f32
    %20 = vector.broadcast %cst_10 : f32 to vector<8x1xf32>
    %21 = arith.cmpf ogt, %19, %20 : vector<8x1xf32>
    %22 = arith.extui %21 : vector<8x1xi1> to vector<8x1xi32>
    %23 = arith.sitofp %22 : vector<8x1xi32> to vector<8x1xf32>
    %24 = tpu.iota {dimensions = array<i32: 1>} : vector<8x128xi32>
    %c0_i32 = arith.constant 0 : i32
    %25 = vector.broadcast %c0_i32 : i32 to vector<8x128xi32>
    %26 = arith.cmpi eq, %24, %25 : vector<8x128xi32>
    %cst_11 = arith.constant 0.000000e+00 : f32
    %27 = vector.shape_cast %23 : vector<8x1xf32> to vector<8x1xf32>
    %28 = vector.broadcast %27 : vector<8x1xf32> to vector<8x128xf32>
    %29 = vector.broadcast %cst_11 : f32 to vector<8x128xf32>
    %30 = arith.select %26, %28, %29 : vector<8x128xi1>, vector<8x128xf32>
    %c1_i32 = arith.constant 1 : i32
    %31 = vector.broadcast %c1_i32 : i32 to vector<8x128xi32>
    %32 = arith.cmpi eq, %24, %31 : vector<8x128xi32>
    %cst_12 = arith.constant 0.000000e+00 : f32
    %33 = vector.shape_cast %19 : vector<8x1xf32> to vector<8x1xf32>
    %34 = vector.broadcast %33 : vector<8x1xf32> to vector<8x128xf32>
    %35 = vector.broadcast %cst_12 : f32 to vector<8x128xf32>
    %36 = arith.select %32, %34, %35 : vector<8x128xi1>, vector<8x128xf32>
    %37 = arith.addf %30, %36 : vector<8x128xf32>
    %c0_13 = arith.constant 0 : index
    %c0_14 = arith.constant 0 : index
    %38 = vector.load %arg6[%c0_13, %c0_14] : memref<8x128xf32, #tpu.memory_space<vmem>>, vector<8x128xf32>
    tpu.vector_store %arg6[%c0_13, %c0_14], %37 {strides = array<i32>} : memref<8x128xf32, #tpu.memory_space<vmem>>, vector<8x128xf32>,
    return
  }
  func.func @transform_0(%arg0: i32) -> (i32, i32) {
    %c0_i32 = arith.constant 0 : i32
    %c0_i32_0 = arith.constant 0 : i32
    return %arg0, %c0_i32 : i32, i32
  }
  func.func @transform_1(%arg0: i32) -> (i32, i32) {
    %c0_i32 = arith.constant 0 : i32
    %c0_i32_0 = arith.constant 0 : i32
    %c0_i32_1 = arith.constant 0 : i32
    return %c0_i32, %c0_i32_0 : i32, i32
  }
  func.func @transform_2(%arg0: i32) -> (i32, i32) {
    %c0_i32 = arith.constant 0 : i32
    %c0_i32_0 = arith.constant 0 : i32
    %c0_i32_1 = arith.constant 0 : i32
    return %c0_i32, %c0_i32_0 : i32, i32
  }
  func.func @transform_3(%arg0: i32) -> (i32, i32) {
    %c0_i32 = arith.constant 0 : i32
    %c0_i32_0 = arith.constant 0 : i32
    %c0_i32_1 = arith.constant 0 : i32
    return %c0_i32, %c0_i32_0 : i32, i32
  }
  func.func @transform_4(%arg0: i32) -> (i32, i32) {
    %c0_i32 = arith.constant 0 : i32
    %c0_i32_0 = arith.constant 0 : i32
    %c0_i32_1 = arith.constant 0 : i32
    return %c0_i32, %c0_i32_0 : i32, i32
  }
  func.func @transform_5(%arg0: i32) -> (i32, i32) {
    %c0_i32 = arith.constant 0 : i32
    %c0_i32_0 = arith.constant 0 : i32
    return %arg0, %c0_i32 : i32, i32
  }
}

</mosaic_0001>

<llo_original>
// kernel: tpu_custom_call.1
$region0: #{tpu_custom_call.1}
  #allocation0 [shape = 'u32[]', space=smem, size = 0x4, offset = 0x4, fixed_abs, tag = 'smem constant byte address 0x4 - core index']
  #allocation1 [shape = 'u32[144,128]{1,0:T(1,128)}', space=vmem, size = 0x12000, scoped, tag = 'internal scratch']
  #allocation2 [shape = 'f32[1,1]{1,0:T(1,128)S(1)}', space=vmem, size = 0x200, scoped, tag = 'scoped memory for tpu_custom_call.1']
  %s0 = inlined_call_operand.vmem [shape: f32[8,1], index: 0, kind: input, shape index: {}]
  %s1 = inlined_call_operand.vmem [shape: f32[1,128], index: 1, kind: input, shape index: {}]
  %s2 = inlined_call_operand.vmem [shape: f32[1,128], index: 2, kind: input, shape index: {}]
  %s3 = inlined_call_operand.vmem [shape: f32[1,128], index: 3, kind: input, shape index: {}]
  %s4 = inlined_call_operand.<no memory space> [shape: f32[1,1], index: 4, kind: input, shape index: {}]
  %s5 = inlined_call_operand.hbm [shape: f32[8,128], index: 5, kind: output, shape index: {}]
  %s6 = sld [smem:[#allocation0]]
  $region30: #{tpu_custom_call.1} parent=0
    _
  %s8 = ssub.s32 1, %s6
  %s9 = scalar_select 0, %s8, %s6
  %v10 = vstv %s4
  %11 = vst [vmem:[#allocation2] sm:$0x1] %v10
  $region1: #{tpu_custom_call.1} parent=0
    #allocation3 [shape = 'u8[4096]{0}', space=vmem, size = 0x1000, scoped, tag = 'output window, operand 0, single buffered']
    #allocation4 [shape = 's32[1]{0}', space=sflag, size = 0x4, scoped, tag = 'scoped memory for tpu_custom_call.1']
    %12 = vsyncpa [#allocation4], 0
    // Predicated region
    $region2: #{tpu_custom_call.1} parent=1 // pred_check
      _
    $region3: #{tpu_custom_call.1} parent=1 // pred_check_branch
      %14 = sbr.rel (0) target = $region5
    $region4: #{tpu_custom_call.1} parent=1 // pred_region
      _
    $region5: #{tpu_custom_call.1} parent=1 // pred_fallthru
      _
    // Predicated region
    $region6: #{tpu_custom_call.1} parent=1 // pred_check
      _
    $region7: #{tpu_custom_call.1} parent=1 // pred_check_branch
      %16 = sbr.rel (0) target = $region9
    $region8: #{tpu_custom_call.1} parent=1 // pred_region
      _
    $region9: #{tpu_custom_call.1} parent=1 // pred_fallthru
      _
    // Predicated region
    $region10: #{tpu_custom_call.1} parent=1 // pred_check
      _
    $region11: #{tpu_custom_call.1} parent=1 // pred_check_branch
      %18 = sbr.rel (0) target = $region13
    $region12: #{tpu_custom_call.1} parent=1 // pred_region
      _
    $region13: #{tpu_custom_call.1} parent=1 // pred_fallthru
      _
    // Predicated region
    $region14: #{tpu_custom_call.1} parent=1 // pred_check
      _
    $region15: #{tpu_custom_call.1} parent=1 // pred_check_branch
      %20 = sbr.rel (0) target = $region17
    $region16: #{tpu_custom_call.1} parent=1 // pred_region
      _
    $region17: #{tpu_custom_call.1} parent=1 // pred_fallthru
      _
    // Predicated region
    $region18: #{tpu_custom_call.1} parent=1 // pred_check
      _
    $region19: #{tpu_custom_call.1} parent=1 // pred_check_branch
      %22 = sbr.rel (0) target = $region21
    $region20: #{tpu_custom_call.1} parent=1 // pred_region
      _
    $region21: #{tpu_custom_call.1} parent=1 // pred_fallthru
      _
    %v23 = vld [vmem:[%s0] sm:$0xff]
    %v24 = vld [vmem:[%s1] sm:$0x1]
    %26 = vset.pattern.permute.xlu0 0
    %27 = vperm.xlu0 %26, %v23
    %v28 = vpop.permute.xlu0 %27
    %v31 = vlaneseq
    %v32 = vshrl.u32 %v31, 7
    %v33 = vsub.s32 0, %v32
    %v34 = vrot.slane %v24, %v33
    %v36 = vmul.f32 %v28, %v34
    %v37 = vld [vmem:[%s2] sm:$0x1]
    %v39 = vlaneseq
    %v40 = vshrl.u32 %v39, 7
    %v41 = vsub.s32 0, %v40
    %v42 = vrot.slane %v37, %v41
    %v44 = vadd.f32 %v36, %v42
    %vm45 = vcmp.gt.f32.partialorder %v44, 1.0
    %v46 = vsel %vm45, 1, 0
    %v47 = vcvt.s32.f32 %v46
    %v48 = vld [vmem:[%s3] sm:$0x1]
    %v50 = vlaneseq
    %v51 = vshrl.u32 %v50, 7
    %v52 = vsub.s32 0, %v51
    %v53 = vrot.slane %v48, %v52
    %v55 = vmul.f32 %v47, %v53
    %56 = vadd.xlane.f32.xlu0 %v55
    %v57 = vpop.xlane.xlu0 %56
    %v58 = vld [vmem:[#allocation2] sm:$0x1]
    %v60 = vlaneseq
    %v61 = vshrl.u32 %v60, 7
    %v62 = vsub.s32 0, %v61
    %v63 = vrot.slane %v58, %v62
    %v65 = vadd.f32 %v57, %v63
    %vm66 = vcmp.gt.f32.partialorder %v65, 1.0
    %v67 = vsel %vm66, 1, 0
    %v68 = vcvt.s32.f32 %v67
    %v69 = vlaneseq
    %v70 = vand.u32 %v69, 127
    %vm71 = vcmp.eq.s32.totalorder %v70, 0
    %73 = vset.pattern.permute.xlu0 0
    %74 = vperm.xlu0 %73, %v68
    %v75 = vpop.permute.xlu0 %74
    %v77 = vsel %vm71, %v75, 0.0
    %vm78 = vcmp.eq.s32.totalorder %v70, 1
    %80 = vset.pattern.permute.xlu0 0
    %81 = vperm.xlu0 %80, %v65
    %v82 = vpop.permute.xlu0 %81
    %v84 = vsel %vm78, %v82, 0.0
    %v85 = vadd.f32 %v77, %v84
    %86 = vst [vmem:[#allocation3] sm:$0xff] %v85
    // Predicated region
    $region22: #{tpu_custom_call.1} parent=1 // pred_check
      _
    $region23: #{tpu_custom_call.1} parent=1 // pred_check_branch
      %88 = sbr.rel (0) target = $region25
    $region24: #{tpu_custom_call.1} parent=1 // pred_region
      %s90 = ssub.s32 128, 128
      %91 = vsyncadd [#allocation4], %s90
      %s93 = sshll.u32 [#allocation3], 4
      %s94 = int_to_ptr.vmem [resolvable:$true] %s93
      %96 = dma.vmem_to_hbm [thread:$0]  %s94, 128, %s5, [#allocation4]
    $region25: #{tpu_custom_call.1} parent=1 // pred_fallthru
      _
    // Predicated region
    $region26: #{tpu_custom_call.1} parent=1 // pred_check
      _
    $region27: #{tpu_custom_call.1} parent=1 // pred_check_branch
      %98 = sbr.rel (0) target = $region29
    $region28: #{tpu_custom_call.1} parent=1 // pred_region
      %99 = dma.done [#allocation4], 128
    $region29: #{tpu_custom_call.1} parent=1 // pred_fallthru
      _
    %100 = vsyncpa [#allocation4], 1

</llo_original>
